<compile_context>
chip_gen: v5e
topology: v5e:2x2
jax: 0.10.0
libtpu: 0.0.40
codegen_flags: <defaults>
</compile_context>

<pallas_src>
import functools

import jax
import jax.numpy as jnp
from jax.experimental import pallas as pl
from jax.experimental.pallas import tpu as pltpu


def _round_up(n: int, m: int) -> int:
    return ((n + m - 1) // m) * m


def _pad_to(a, shape):
    """Zero-pad a 2-D array up to `shape` (no-op copy avoided when already sized)."""
    if a.shape == tuple(shape):
        return a
    pads = [(0, t - s) for s, t in zip(a.shape, shape)]
    return jnp.pad(a, pads)


def mlp_kernel(x_ref, w1_ref, b1_ref, w2_ref, b2_ref, o_ref):
    # hidden = relu(x @ W1 + b1)    -- all tiles lane-dense (last dim % 128 == 0)
    h = jnp.dot(x_ref[...], w1_ref[...], preferred_element_type=jnp.float32)
    h = jnp.maximum(h + b1_ref[...], 0.0)           # full-vreg VPU add + ReLU
    # out = h @ W2 + b2
    y = jnp.dot(h.astype(w2_ref.dtype), w2_ref[...],
                preferred_element_type=jnp.float32)
    o_ref[...] = (y + b2_ref[...]).astype(o_ref.dtype)


@functools.partial(jax.jit, static_argnames=("block_b",))
def three_layer_perceptron(x, w1, b1, w2, b2, *, block_b: int = 512):
    """x: (B, in), w1: (in, hidden), b1: (hidden,), w2: (hidden, classes), b2: (classes,)."""
    B, In = x.shape
    H = w1.shape[1]
    C = w2.shape[1]

    # Pad feature dims to 128 (lane-dense); batch tile is a multiple of 8 sublanes.
    InP = _round_up(In, 128)
    HP = _round_up(H, 128)
    CP = _round_up(C, 128)
    TB = min(block_b, _round_up(B, 8))
    BP = _round_up(B, TB)

    xp = _pad_to(x, (BP, InP))
    w1p = _pad_to(w1, (InP, HP))
    b1p = _pad_to(b1.reshape(1, -1), (1, HP))
    w2p = _pad_to(w2, (HP, CP))
    b2p = _pad_to(b2.reshape(1, -1), (1, CP))

    grid = (BP // TB,)

    flops = 2 * BP * InP * HP + 2 * BP * HP * CP
    bytes_accessed = 4 * (BP * InP + InP * HP + HP * CP + HP + CP + BP * CP)

    out_padded = pl.pallas_call(
        mlp_kernel,
        out_shape=jax.ShapeDtypeStruct((BP, CP), x.dtype),
        grid=grid,
        in_specs=[
            pl.BlockSpec((TB, InP), lambda i: (i, 0)),   # activations stream
            pl.BlockSpec((InP, HP), lambda i: (0, 0)),   # weights resident
            pl.BlockSpec((1, HP), lambda i: (0, 0)),
            pl.BlockSpec((HP, CP), lambda i: (0, 0)),
            pl.BlockSpec((1, CP), lambda i: (0, 0)),
        ],
        out_specs=pl.BlockSpec((TB, CP), lambda i: (i, 0)),  # lane-dense store
        compiler_params=pltpu.CompilerParams(
            dimension_semantics=("parallel",),
        ),
        cost_estimate=pl.CostEstimate(
            flops=flops, transcendentals=0, bytes_accessed=bytes_accessed),
    )(xp, w1p, b1p, w2p, b2p)

    if (BP, CP) == (B, C):
        return out_padded
    return out_padded[:B, :C]


def xavier_uniform(key, fan_out, fan_in, dtype=jnp.float32):
    # Matches torch.nn.init.xavier_uniform_ with gain=1.0 on a (out, in) weight.
    bound = (6.0 / (fan_in + fan_out)) ** 0.5
    return jax.random.uniform(key, (fan_out, fan_in), dtype=dtype,
                              minval=-bound, maxval=bound)


if __name__ == "__main__":
    batch = 8
    input_size = 64
    hidden_size = 32
    num_classes = 10

    key = jax.random.PRNGKey(0)
    k_x, k_w1, k_w2 = jax.random.split(key, 3)

    x = jax.random.normal(k_x, (batch, input_size), dtype=jnp.float32)

    # Deterministic Xavier-uniform init (PyTorch convention: weight is (out, in)),
    # then transpose to (in, out) for the kernel's x @ W layout. Biases are zeros.
    w1_t = xavier_uniform(k_w1, hidden_size, input_size)      # (H, In)
    b1 = jnp.zeros((hidden_size,), dtype=jnp.float32)
    w2_t = xavier_uniform(k_w2, num_classes, hidden_size)     # (C, H)
    b2 = jnp.zeros((num_classes,), dtype=jnp.float32)

    w1 = w1_t.T   # (In, H)
    w2 = w2_t.T   # (H, C)

    out = three_layer_perceptron(x, w1, b1, w2, b2)
    out = jax.block_until_ready(out)

    # Reference check in plain JAX.
    ref = jnp.maximum(x @ w1 + b1, 0.0) @ w2 + b2
    assert out.shape == (batch, num_classes)
    assert jnp.allclose(out, ref, atol=1e-5, rtol=1e-5)

    print("KERNEL_OK")
</pallas_src>

<mosaic_0001>
module attributes {stable_mosaic.version = 11 : i64} {
  func.func @mlp_kernel(%arg0: i32, %arg1: memref<8x128xf32, #tpu.memory_space<vmem>>, %arg2: memref<128x128xf32, #tpu.memory_space<vmem>>, %arg3: memref<1x128xf32, #tpu.memory_space<vmem>>, %arg4: memref<128x128xf32, #tpu.memory_space<vmem>>, %arg5: memref<1x128xf32, #tpu.memory_space<vmem>>, %arg6: memref<8x128xf32, #tpu.memory_space<vmem>>) attributes {dimension_semantics = [#tpu.dimension_semantics<parallel>], iteration_bounds = array<i64: 1>, scalar_prefetch = 0 : i64, scratch_operands = 0 : i64, tpu.core_type = #tpu.core_type<tc>, window_params = [{transform_indices = @transform_0, window_bounds = array<i64: 8, 128>}, {pipeline_mode = #tpu.pipeline_mode<synchronous>, transform_indices = @transform_1, window_bounds = array<i64: 128, 128>}, {pipeline_mode = #tpu.pipeline_mode<synchronous>, transform_indices = @transform_2, window_bounds = array<i64: 1, 128>}, {pipeline_mode = #tpu.pipeline_mode<synchronous>, transform_indices = @transform_3, window_bounds = array<i64: 128, 128>}, {pipeline_mode = #tpu.pipeline_mode<synchronous>, transform_indices = @transform_4, window_bounds = array<i64: 1, 128>}, {transform_indices = @transform_5, window_bounds = array<i64: 8, 128>}]} {
    %c0 = arith.constant 0 : index
    %c0_0 = arith.constant 0 : index
    %0 = vector.load %arg1[%c0, %c0_0] : memref<8x128xf32, #tpu.memory_space<vmem>>, vector<8x128xf32>
    %c0_1 = arith.constant 0 : index
    %c0_2 = arith.constant 0 : index
    %1 = vector.load %arg2[%c0_1, %c0_2] : memref<128x128xf32, #tpu.memory_space<vmem>>, vector<128x128xf32>
    %cst = arith.constant dense<0.000000e+00> : vector<8x128xf32>
    %2 = tpu.matmul %0, %1, %cst {dimension_numbers = #tpu.dot_dimension_numbers<[1], [0], [0], [1], [0, 0, 1, 1], [], []>} : vector<8x128xf32>, vector<128x128xf32>, vector<8x128xf32> -> vector<8x128xf32>
    %c0_3 = arith.constant 0 : index
    %c0_4 = arith.constant 0 : index
    %3 = vector.load %arg3[%c0_3, %c0_4] : memref<1x128xf32, #tpu.memory_space<vmem>>, vector<1x128xf32>
    %4 = vector.broadcast %3 : vector<1x128xf32> to vector<8x128xf32>
    %5 = arith.addf %2, %4 : vector<8x128xf32>
    %cst_5 = arith.constant 0.000000e+00 : f32
    %6 = vector.broadcast %cst_5 : f32 to vector<8x128xf32>
    %7 = arith.maximumf %5, %6 : vector<8x128xf32>
    %c0_6 = arith.constant 0 : index
    %c0_7 = arith.constant 0 : index
    %8 = vector.load %arg4[%c0_6, %c0_7] : memref<128x128xf32, #tpu.memory_space<vmem>>, vector<128x128xf32>
    %cst_8 = arith.constant dense<0.000000e+00> : vector<8x128xf32>
    %9 = tpu.matmul %7, %8, %cst_8 {dimension_numbers = #tpu.dot_dimension_numbers<[1], [0], [0], [1], [0, 0, 1, 1], [], []>} : vector<8x128xf32>, vector<128x128xf32>, vector<8x128xf32> -> vector<8x128xf32>
    %c0_9 = arith.constant 0 : index
    %c0_10 = arith.constant 0 : index
    %10 = vector.load %arg5[%c0_9, %c0_10] : memref<1x128xf32, #tpu.memory_space<vmem>>, vector<1x128xf32>
    %11 = vector.broadcast %10 : vector<1x128xf32> to vector<8x128xf32>
    %12 = arith.addf %9, %11 : vector<8x128xf32>
    %c0_11 = arith.constant 0 : index
    %c0_12 = arith.constant 0 : index
    %13 = vector.load %arg6[%c0_11, %c0_12] : memref<8x128xf32, #tpu.memory_space<vmem>>, vector<8x128xf32>
    tpu.vector_store %arg6[%c0_11, %c0_12], %12 {strides = array<i32>} : memref<8x128xf32, #tpu.memory_space<vmem>>, vector<8x128xf32>,
    return
  }
  func.func @transform_0(%arg0: i32) -> (i32, i32) {
    %c0_i32 = arith.constant 0 : i32
    %c0_i32_0 = arith.constant 0 : i32
    return %arg0, %c0_i32 : i32, i32
  }
  func.func @transform_1(%arg0: i32) -> (i32, i32) {
    %c0_i32 = arith.constant 0 : i32
    %c0_i32_0 = arith.constant 0 : i32
    %c0_i32_1 = arith.constant 0 : i32
    return %c0_i32, %c0_i32_0 : i32, i32
  }
  func.func @transform_2(%arg0: i32) -> (i32, i32) {
    %c0_i32 = arith.constant 0 : i32
    %c0_i32_0 = arith.constant 0 : i32
    %c0_i32_1 = arith.constant 0 : i32
    return %c0_i32, %c0_i32_0 : i32, i32
  }
  func.func @transform_3(%arg0: i32) -> (i32, i32) {
    %c0_i32 = arith.constant 0 : i32
    %c0_i32_0 = arith.constant 0 : i32
    %c0_i32_1 = arith.constant 0 : i32
    return %c0_i32, %c0_i32_0 : i32, i32
  }
  func.func @transform_4(%arg0: i32) -> (i32, i32) {
    %c0_i32 = arith.constant 0 : i32
    %c0_i32_0 = arith.constant 0 : i32
    %c0_i32_1 = arith.constant 0 : i32
    return %c0_i32, %c0_i32_0 : i32, i32
  }
  func.func @transform_5(%arg0: i32) -> (i32, i32) {
    %c0_i32 = arith.constant 0 : i32
    %c0_i32_0 = arith.constant 0 : i32
    return %arg0, %c0_i32 : i32, i32
  }
}

</mosaic_0001>

<llo_original>
// kernel: three_layer_perceptron.1
$region0: #{three_layer_perceptron.1}
  #allocation0 [shape = 'u32[]', space=smem, size = 0x4, offset = 0x4, fixed_abs, tag = 'smem constant byte address 0x4 - core index']
  #allocation1 [shape = 'u32[72,128]{1,0:T(1,128)}', space=vmem, size = 0x9000, scoped, tag = 'internal scratch']
  %s0 = inlined_call_operand.vmem [shape: f32[8,128], index: 0, kind: input, shape index: {}]
  %s1 = inlined_call_operand.vmem [shape: f32[128,128], index: 1, kind: input, shape index: {}]
  %s2 = inlined_call_operand.vmem [shape: f32[1,128], index: 2, kind: input, shape index: {}]
  %s3 = inlined_call_operand.vmem [shape: f32[128,128], index: 3, kind: input, shape index: {}]
  %s4 = inlined_call_operand.vmem [shape: f32[1,128], index: 4, kind: input, shape index: {}]
  %s5 = inlined_call_operand.hbm [shape: f32[8,128], index: 5, kind: output, shape index: {}]
  %s6 = sld [smem:[#allocation0]]
  $region30: #{three_layer_perceptron.1} parent=0
    _
  %s8 = ssub.s32 1, %s6
  %s9 = scalar_select 0, %s8, %s6
  $region1: #{three_layer_perceptron.1} parent=0
    #allocation2 [shape = 'u8[4096]{0}', space=vmem, size = 0x1000, scoped, tag = 'output window, operand 0, single buffered']
    #allocation3 [shape = 's32[1]{0}', space=sflag, size = 0x4, scoped, tag = 'scoped memory for three_layer_perceptron.1']
    %10 = vsyncpa [#allocation3], 0
    // Predicated region
    $region2: #{three_layer_perceptron.1} parent=1 // pred_check
      _
    $region3: #{three_layer_perceptron.1} parent=1 // pred_check_branch
      %12 = sbr.rel (0) target = $region5
    $region4: #{three_layer_perceptron.1} parent=1 // pred_region
      _
    $region5: #{three_layer_perceptron.1} parent=1 // pred_fallthru
      _
    // Predicated region
    $region6: #{three_layer_perceptron.1} parent=1 // pred_check
      _
    $region7: #{three_layer_perceptron.1} parent=1 // pred_check_branch
      %14 = sbr.rel (0) target = $region9
    $region8: #{three_layer_perceptron.1} parent=1 // pred_region
      _
    $region9: #{three_layer_perceptron.1} parent=1 // pred_fallthru
      _
    // Predicated region
    $region10: #{three_layer_perceptron.1} parent=1 // pred_check
      _
    $region11: #{three_layer_perceptron.1} parent=1 // pred_check_branch
      %16 = sbr.rel (0) target = $region13
    $region12: #{three_layer_perceptron.1} parent=1 // pred_region
      _
    $region13: #{three_layer_perceptron.1} parent=1 // pred_fallthru
      _
    // Predicated region
    $region14: #{three_layer_perceptron.1} parent=1 // pred_check
      _
    $region15: #{three_layer_perceptron.1} parent=1 // pred_check_branch
      %18 = sbr.rel (0) target = $region17
    $region16: #{three_layer_perceptron.1} parent=1 // pred_region
      _
    $region17: #{three_layer_perceptron.1} parent=1 // pred_fallthru
      _
    // Predicated region
    $region18: #{three_layer_perceptron.1} parent=1 // pred_check
      _
    $region19: #{three_layer_perceptron.1} parent=1 // pred_check_branch
      %20 = sbr.rel (0) target = $region21
    $region20: #{three_layer_perceptron.1} parent=1 // pred_region
      _
    $region21: #{three_layer_perceptron.1} parent=1 // pred_fallthru
      _
    %v21 = vld [vmem:[%s0] sm:$0xff]
    %v22 = vld [vmem:[%s1] sm:$0xff]
    %v23 = vld [vmem:[%s1 + $0x8] sm:$0xff]
    %v24 = vld [vmem:[%s1 + $0x10] sm:$0xff]
    %v25 = vld [vmem:[%s1 + $0x18] sm:$0xff]
    %v26 = vld [vmem:[%s1 + $0x20] sm:$0xff]
    %v27 = vld [vmem:[%s1 + $0x28] sm:$0xff]
    %v28 = vld [vmem:[%s1 + $0x30] sm:$0xff]
    %v29 = vld [vmem:[%s1 + $0x38] sm:$0xff]
    %v30 = vld [vmem:[%s1 + $0x40] sm:$0xff]
    %v31 = vld [vmem:[%s1 + $0x48] sm:$0xff]
    %v32 = vld [vmem:[%s1 + $0x50] sm:$0xff]
    %v33 = vld [vmem:[%s1 + $0x58] sm:$0xff]
    %v34 = vld [vmem:[%s1 + $0x60] sm:$0xff]
    %v35 = vld [vmem:[%s1 + $0x68] sm:$0xff]
    %v36 = vld [vmem:[%s1 + $0x70] sm:$0xff]
    %v37 = vld [vmem:[%s1 + $0x78] sm:$0xff]
    %v38 = vld [vmem:[%s2] sm:$0x1]
    %v40 = vperm.slane %v38, 0
    %42 = vmatpush.msra.mxu0 %v37
    %43 = vmatpush.msra.mxu0 %v36
    %44 = vmatpush.msra.mxu0 %v35
    %45 = vmatpush.msra.mxu0 %v34
    %46 = vmatpush.msra.mxu0 %v33
    %47 = vmatpush.msra.mxu0 %v32
    %48 = vmatpush.msra.mxu0 %v31
    %49 = vmatpush.msra.mxu0 %v30
    %50 = vmatpush.msra.mxu0 %v29
    %51 = vmatpush.msra.mxu0 %v28
    %52 = vmatpush.msra.mxu0 %v27
    %53 = vmatpush.msra.mxu0 %v26
    %54 = vmatpush.msra.mxu0 %v25
    %55 = vmatpush.msra.mxu0 %v24
    %56 = vmatpush.msra.mxu0 %v23
    %57 = vmatpush.msra.mxu0 %v22
    %58 = vmatmul.f32.gmra.mxu0 %v21
    %v59 = vpop.f32.mrf.mxu0
    %v60 = vadd.f32 %v40, %v59
    %61 = vdwg.mxu0
    %v62 = vmax.f32 %v60, 0.0
    %v63 = vld [vmem:[%s3] sm:$0xff]
    %v64 = vld [vmem:[%s3 + $0x8] sm:$0xff]
    %v65 = vld [vmem:[%s3 + $0x10] sm:$0xff]
    %v66 = vld [vmem:[%s3 + $0x18] sm:$0xff]
    %v67 = vld [vmem:[%s3 + $0x20] sm:$0xff]
    %v68 = vld [vmem:[%s3 + $0x28] sm:$0xff]
    %v69 = vld [vmem:[%s3 + $0x30] sm:$0xff]
    %v70 = vld [vmem:[%s3 + $0x38] sm:$0xff]
    %v71 = vld [vmem:[%s3 + $0x40] sm:$0xff]
    %v72 = vld [vmem:[%s3 + $0x48] sm:$0xff]
    %v73 = vld [vmem:[%s3 + $0x50] sm:$0xff]
    %v74 = vld [vmem:[%s3 + $0x58] sm:$0xff]
    %v75 = vld [vmem:[%s3 + $0x60] sm:$0xff]
    %v76 = vld [vmem:[%s3 + $0x68] sm:$0xff]
    %v77 = vld [vmem:[%s3 + $0x70] sm:$0xff]
    %v78 = vld [vmem:[%s3 + $0x78] sm:$0xff]
    %v79 = vld [vmem:[%s4] sm:$0x1]
    %v81 = vperm.slane %v79, 0
    %83 = vmatpush.msra.mxu0 %v78
    %84 = vmatpush.msra.mxu0 %v77
    %85 = vmatpush.msra.mxu0 %v76
    %86 = vmatpush.msra.mxu0 %v75
    %87 = vmatpush.msra.mxu0 %v74
    %88 = vmatpush.msra.mxu0 %v73
    %89 = vmatpush.msra.mxu0 %v72
    %90 = vmatpush.msra.mxu0 %v71
    %91 = vmatpush.msra.mxu0 %v70
    %92 = vmatpush.msra.mxu0 %v69
    %93 = vmatpush.msra.mxu0 %v68
    %94 = vmatpush.msra.mxu0 %v67
    %95 = vmatpush.msra.mxu0 %v66
    %96 = vmatpush.msra.mxu0 %v65
    %97 = vmatpush.msra.mxu0 %v64
    %98 = vmatpush.msra.mxu0 %v63
    %99 = vmatmul.f32.gmra.mxu0 %v62
    %v100 = vpop.f32.mrf.mxu0
    %v101 = vadd.f32 %v81, %v100
    %102 = vdwg.mxu0
    %103 = vst [vmem:[#allocation2] sm:$0xff] %v101
    // Predicated region
    $region22: #{three_layer_perceptron.1} parent=1 // pred_check
      _
    $region23: #{three_layer_perceptron.1} parent=1 // pred_check_branch
      %105 = sbr.rel (0) target = $region25
    $region24: #{three_layer_perceptron.1} parent=1 // pred_region
      %107 = vsyncadd [#allocation3], 0
      %s109 = sshll.u32 [#allocation2], 4
      %s110 = int_to_ptr.vmem [resolvable:$true] %s109
      %s111 = sshll.u32 %s5, 4
      %s112 = int_to_ptr.hbm [resolvable:$true] %s111
      %114 = dma.vmem_to_hbm [thread:$0]  %s110, 128, %s112, [#allocation3]
    $region25: #{three_layer_perceptron.1} parent=1 // pred_fallthru
      _
    // Predicated region
    $region26: #{three_layer_perceptron.1} parent=1 // pred_check
      _
    $region27: #{three_layer_perceptron.1} parent=1 // pred_check_branch
      %116 = sbr.rel (0) target = $region29
    $region28: #{three_layer_perceptron.1} parent=1 // pred_region
      %118 = dma.done [#allocation3], 128
    $region29: #{three_layer_perceptron.1} parent=1 // pred_fallthru
      _
    %119 = vsyncpa [#allocation3], 1

</llo_original>
